<compile_context>
chip_gen: v7x
topology: tpu7x:2x2x1
jax: 0.10.0
libtpu: 0.0.40
codegen_flags: <defaults>
</compile_context>

<pallas_src>
import functools

import jax
import jax.numpy as jnp
from jax.experimental import pallas as pl
from jax.experimental.pallas import tpu as pltpu

LANE = 128
SUBLANE_BF16 = 16   # bf16 packs 16 rows per vreg -> keep batch tiles 16-aligned


def _round_up(n, m):
    return ((n + m - 1) // m) * m


def _pad_to(a, shape):
    pads = [(0, t - s) for s, t in zip(a.shape, shape)]
    if all(p == (0, 0) for p in pads):
        return a
    return jnp.pad(a, pads)


def _vae_kernel(tile_b, true_batch, l_pad,
                x_ref, eps_ref,
                ew1, eb1, ew2, eb2,      # encoder
                pw, pb,                  # merged mean|log_std param layer
                fw, fb,                  # fused (resize @ decoder[0]) layer
                dw2, db2,                # decoder output layer
                recon_ref, kl_ref):
    f32 = jnp.float32
    bf16 = jnp.bfloat16

    x = x_ref[...]                       # already bf16

    # ---- encoder: Linear + ReLU, Linear + ReLU ----
    h = jnp.dot(x, ew1[...], preferred_element_type=f32) + eb1[...]
    h = jnp.maximum(h, 0.0)
    h = jnp.dot(h.astype(bf16), ew2[...], preferred_element_type=f32) + eb2[...]
    h = jnp.maximum(h, 0.0)

    # ---- param layer: single 2*l_pad-wide matmul, lane-aligned split ----
    params = jnp.dot(h.astype(bf16), pw[...], preferred_element_type=f32) + pb[...]
    mean = params[:, :l_pad]
    log_std = params[:, l_pad:]
    std = jnp.exp(log_std)

    # ---- reparameterization ----
    code = eps_ref[...] * std + mean

    # ---- KL partial for this batch tile ----
    # Padded latent columns have mean=0, log_std=0 -> term = 0.5*(0+1-0-1) = 0,
    # so summing over the padded lane width is exact. Padded batch rows masked.
    row_ids = (jax.lax.broadcasted_iota(jnp.int32, (tile_b, 1), 0)
               + pl.program_id(0) * tile_b)
    row_mask = row_ids < true_batch
    kl_terms = 0.5 * (mean * mean + std * std - 2.0 * log_std - 1.0)
    per_row = jnp.sum(kl_terms, axis=-1, keepdims=True)
    partial = jnp.sum(jnp.where(row_mask, per_row, 0.0))
    kl_ref[...] = jnp.full(kl_ref.shape, partial, dtype=kl_ref.dtype)

    # ---- fused resize + decoder[0] (ReLU), then output Linear ----
    d = jnp.dot(code.astype(bf16), fw[...], preferred_element_type=f32) + fb[...]
    d = jnp.maximum(d, 0.0)
    recon = jnp.dot(d.astype(bf16), dw2[...], preferred_element_type=f32) + db2[...]
    recon_ref[...] = recon.astype(recon_ref.dtype)


def vae_forward(x, eps, weights, latent_dim, tile_b=512):
    """Full VAE forward pass in one Pallas kernel.

    weights: (ew1, eb1, ew2, eb2, pw, pb, rw, rb, dw1, db1, dw2, db2)
             weights shaped (in, out), biases (1, out), all f32 (logical).
    Returns (reconstruction (B, D_in) f32, kl_loss scalar f32).
    """
    batch, d_in = x.shape
    ew1, eb1, ew2, eb2, pw, pb, rw, rb, dw1, db1, dw2, db2 = weights

    h1 = ew1.shape[1]
    out_size = ew2.shape[1]
    h2 = dw1.shape[1]

    h1_pad = _round_up(h1, LANE)
    o_pad = _round_up(out_size, LANE)
    l_pad = _round_up(latent_dim, LANE)
    h2_pad = _round_up(h2, LANE)

    # Batch tile: big to amortize per-grid-step overhead; multiple of 16 for
    # bf16 sublane packing; keep >= 2 tiles when batch allows (v7x megacore).
    bq = _round_up(batch, SUBLANE_BF16)
    tb = max(SUBLANE_BF16, min(_round_up(tile_b, SUBLANE_BF16), bq))
    if bq <= tb and bq >= 2 * SUBLANE_BF16:
        tb = _round_up(bq // 2, SUBLANE_BF16)
    b_pad = _round_up(batch, tb)
    num_tiles = b_pad // tb

    f32 = jnp.float32
    bf16 = jnp.bfloat16

    # Merged mean|log_std heads, each padded to a lane boundary so the
    # in-kernel split at column l_pad is a free (lane-aligned) slice.
    pw_m = _pad_to(pw[:, :latent_dim], (out_size, l_pad))
    pw_s = _pad_to(pw[:, latent_dim:2 * latent_dim], (out_size, l_pad))
    pw_merged = _pad_to(jnp.concatenate([pw_m, pw_s], axis=1), (o_pad, 2 * l_pad))
    pb_m = _pad_to(pb[:, :latent_dim], (1, l_pad))
    pb_s = _pad_to(pb[:, latent_dim:2 * latent_dim], (1, l_pad))
    pb_merged = jnp.concatenate([pb_m, pb_s], axis=1)

    # Fuse the resize Linear into decoder[0] (no nonlinearity between them).
    fw = rw.astype(f32) @ dw1.astype(f32)              # (latent, h2)
    fb = rb.astype(f32) @ dw1.astype(f32) + db1        # (1, h2)

    padded = (
        _pad_to(ew1, (d_in, h1_pad)).astype(bf16),
        _pad_to(eb1, (1, h1_pad)).astype(f32),
        _pad_to(ew2, (h1_pad, o_pad)).astype(bf16),
        _pad_to(eb2, (1, o_pad)).astype(f32),
        pw_merged.astype(bf16),
        pb_merged.astype(f32),
        _pad_to(fw, (l_pad, h2_pad)).astype(bf16),
        _pad_to(fb, (1, h2_pad)).astype(f32),
        _pad_to(dw2, (h2_pad, d_in)).astype(bf16),
        db2.reshape(1, -1).astype(f32),
    )

    # x is only consumed as bf16 by the first matmul -> DMA it as bf16.
    # No lane padding for x / recon: true d_in kept as full-extent last dim.
    x_p = _pad_to(x.astype(bf16), (b_pad, d_in))
    eps_p = _pad_to(eps.astype(f32), (b_pad, l_pad))

    def batch_spec(cols):
        return pl.BlockSpec((tb, cols), lambda i: (i, 0))

    def const_spec(a):
        # Full block + constant index_map => weights stay VMEM-resident across
        # batch tiles (no re-DMA). Weight bytes are tiny here, so the default
        # double-buffering of these constant blocks costs negligible VMEM.
        return pl.BlockSpec(a.shape, lambda i: (0, 0))

    in_specs = [batch_spec(d_in), batch_spec(l_pad)] + [const_spec(a) for a in padded]
    out_specs = (
        pl.BlockSpec((tb, d_in), lambda i: (i, 0)),
        pl.BlockSpec((1, 1, LANE), lambda i: (i, 0, 0)),   # per-tile KL partial
    )
    out_shape = (
        jax.ShapeDtypeStruct((b_pad, d_in), jnp.float32),
        jax.ShapeDtypeStruct((num_tiles, 1, LANE), jnp.float32),
    )

    # VMEM budget: real footprint (double-buffered IO blocks + weights +
    # intermediates) plus margin, capped at 48 MiB so it is v7x-safe.
    w_bytes = sum(int(a.size) * a.dtype.itemsize for a in padded)
    io_blk = tb * d_in * 2 + tb * l_pad * 4 + tb * d_in * 4 + LANE * 4
    act_bytes = tb * (h1_pad + o_pad + 2 * l_pad + l_pad + h2_pad + d_in) * 4
    footprint = 2 * w_bytes + 2 * io_blk + act_bytes
    vmem_limit = int(min(max(footprint + (16 << 20), 24 << 20), 48 << 20))

    flops = 2 * b_pad * (d_in * h1_pad + h1_pad * o_pad + o_pad * 2 * l_pad
                         + l_pad * h2_pad + h2_pad * d_in)
    bytes_acc = (w_bytes + int(x_p.size) * 2 + int(eps_p.size) * 4
                 + b_pad * d_in * 4 + num_tiles * LANE * 4)
    cost = pl.CostEstimate(flops=int(flops),
                           transcendentals=int(b_pad * l_pad),
                           bytes_accessed=int(bytes_acc))

    recon_p, kl_part = pl.pallas_call(
        functools.partial(_vae_kernel, tb, batch, l_pad),
        grid=(num_tiles,),
        in_specs=in_specs,
        out_specs=out_specs,
        out_shape=out_shape,
        compiler_params=pltpu.CompilerParams(
            dimension_semantics=("parallel",),   # shard batch tiles over TCs
            vmem_limit_bytes=vmem_limit),
        cost_estimate=cost,
    )(x_p, eps_p, *padded)

    recon = recon_p if b_pad == batch else recon_p[:batch]
    kl = jnp.sum(kl_part[:, 0, 0]) / (batch * latent_dim)
    return recon, kl


def _vae_reference(x, eps, weights, latent_dim):
    """Pure-JAX f32 reference matching the PyTorch forward."""
    ew1, eb1, ew2, eb2, pw, pb, rw, rb, dw1, db1, dw2, db2 = weights
    h = jnp.maximum(x @ ew1 + eb1, 0.0)
    h = jnp.maximum(h @ ew2 + eb2, 0.0)
    params = h @ pw + pb
    mean = params[:, :latent_dim]
    log_std = params[:, latent_dim:2 * latent_dim]
    std = jnp.exp(log_std)
    code = eps * std + mean
    kl = 0.5 * jnp.sum(mean**2 + std**2 - 2.0 * log_std - 1.0) / (x.shape[0] * latent_dim)
    r = code @ rw + rb
    d = jnp.maximum(r @ dw1 + db1, 0.0)
    recon = d @ dw2 + db2
    return recon, kl


def _init_linear(key, fan_in, fan_out):
    """Deterministic PyTorch-style init; weight stored as (in, out)."""
    kw, kb = jax.random.split(key)
    bound = 1.0 / jnp.sqrt(fan_in)
    w = jax.random.uniform(kw, (fan_in, fan_out), jnp.float32, -bound, bound)
    b = jax.random.uniform(kb, (1, fan_out), jnp.float32, -bound, bound)
    return w, b


if __name__ == "__main__":
    # Small logical shapes consistent with the module.
    B, D_IN, H1, OUT_SIZE, LATENT, H2 = 2, 16, 32, 32, 8, 32

    root = jax.random.PRNGKey(0)
    keys = jax.random.split(root, 8)

    # encoder
    ew1, eb1 = _init_linear(keys[0], D_IN, H1)
    ew2, eb2 = _init_linear(keys[1], H1, OUT_SIZE)
    # param_layer: out_size -> 2*latent
    pw, pb = _init_linear(keys[2], OUT_SIZE, 2 * LATENT)
    # resize: latent -> out_size (decoder[0] is LinearLayer, so no UnFlatten)
    rw, rb = _init_linear(keys[3], LATENT, OUT_SIZE)
    # decoder
    dw1, db1 = _init_linear(keys[4], OUT_SIZE, H2)
    dw2, db2 = _init_linear(keys[5], H2, D_IN)

    weights = (ew1, eb1, ew2, eb2, pw, pb, rw, rb, dw1, db1, dw2, db2)

    # input and reparameterization noise (torch.randn_like equivalent)
    x = jax.random.normal(keys[6], (B, D_IN), jnp.float32)
    eps = jax.random.normal(keys[7], (B, LATENT), jnp.float32)

    recon, kl = vae_forward(x, eps, weights, LATENT)
    jax.block_until_ready(recon)
    jax.block_until_ready(kl)

    assert recon.shape == (B, D_IN)
    assert kl.shape == ()
    assert bool(jnp.isfinite(kl))

    # Loose tolerance: kernel uses bf16 weights + fused resize/decoder[0].
    recon_ref, kl_ref = _vae_reference(x, eps, weights, LATENT)
    recon_err = float(jnp.max(jnp.abs(recon - recon_ref)))
    kl_err = abs(float(kl) - float(kl_ref))
    assert recon_err < 0.1, f"recon mismatch: {recon_err}"
    assert kl_err < 0.1, f"kl mismatch: {kl_err}"

    print("KERNEL_OK")
</pallas_src>

<mosaic_0001>
module attributes {stable_mosaic.version = 11 : i64} {
  func.func @_vae_kernel(%arg0: i32, %arg1: memref<16x16xbf16, #tpu.memory_space<vmem>>, %arg2: memref<16x128xf32, #tpu.memory_space<vmem>>, %arg3: memref<16x128xbf16, #tpu.memory_space<vmem>>, %arg4: memref<1x128xf32, #tpu.memory_space<vmem>>, %arg5: memref<128x128xbf16, #tpu.memory_space<vmem>>, %arg6: memref<1x128xf32, #tpu.memory_space<vmem>>, %arg7: memref<128x256xbf16, #tpu.memory_space<vmem>>, %arg8: memref<1x256xf32, #tpu.memory_space<vmem>>, %arg9: memref<128x128xbf16, #tpu.memory_space<vmem>>, %arg10: memref<1x128xf32, #tpu.memory_space<vmem>>, %arg11: memref<128x16xbf16, #tpu.memory_space<vmem>>, %arg12: memref<1x16xf32, #tpu.memory_space<vmem>>, %arg13: memref<16x16xf32, #tpu.memory_space<vmem>>, %arg14: memref<1x1x128xf32, #tpu.memory_space<vmem>>) attributes {dimension_semantics = [#tpu.dimension_semantics<parallel>], iteration_bounds = array<i64: 1>, scalar_prefetch = 0 : i64, scratch_operands = 0 : i64, tpu.core_type = #tpu.core_type<tc>, window_params = [{transform_indices = @transform_0, window_bounds = array<i64: 16, 16>}, {transform_indices = @transform_1, window_bounds = array<i64: 16, 128>}, {pipeline_mode = #tpu.pipeline_mode<synchronous>, transform_indices = @transform_2, window_bounds = array<i64: 16, 128>}, {pipeline_mode = #tpu.pipeline_mode<synchronous>, transform_indices = @transform_3, window_bounds = array<i64: 1, 128>}, {pipeline_mode = #tpu.pipeline_mode<synchronous>, transform_indices = @transform_4, window_bounds = array<i64: 128, 128>}, {pipeline_mode = #tpu.pipeline_mode<synchronous>, transform_indices = @transform_5, window_bounds = array<i64: 1, 128>}, {pipeline_mode = #tpu.pipeline_mode<synchronous>, transform_indices = @transform_6, window_bounds = array<i64: 128, 256>}, {pipeline_mode = #tpu.pipeline_mode<synchronous>, transform_indices = @transform_7, window_bounds = array<i64: 1, 256>}, {pipeline_mode = #tpu.pipeline_mode<synchronous>, transform_indices = @transform_8, window_bounds = array<i64: 128, 128>}, {pipeline_mode = #tpu.pipeline_mode<synchronous>, transform_indices = @transform_9, window_bounds = array<i64: 1, 128>}, {pipeline_mode = #tpu.pipeline_mode<synchronous>, transform_indices = @transform_10, window_bounds = array<i64: 128, 16>}, {pipeline_mode = #tpu.pipeline_mode<synchronous>, transform_indices = @transform_11, window_bounds = array<i64: 1, 16>}, {transform_indices = @transform_12, window_bounds = array<i64: 16, 16>}, {transform_indices = @transform_13, window_bounds = array<i64: 1, 1, 128>}]} {
    %c0 = arith.constant 0 : index
    %c0_0 = arith.constant 0 : index
    %0 = vector.load %arg1[%c0, %c0_0] : memref<16x16xbf16, #tpu.memory_space<vmem>>, vector<16x16xbf16>
    %c0_1 = arith.constant 0 : index
    %c0_2 = arith.constant 0 : index
    %1 = vector.load %arg3[%c0_1, %c0_2] : memref<16x128xbf16, #tpu.memory_space<vmem>>, vector<16x128xbf16>
    %cst = arith.constant dense<0.000000e+00> : vector<16x128xf32>
    %2 = tpu.matmul %0, %1, %cst {dimension_numbers = #tpu.dot_dimension_numbers<[1], [0], [0], [1], [0, 0, 1, 1], [], []>} : vector<16x16xbf16>, vector<16x128xbf16>, vector<16x128xf32> -> vector<16x128xf32>
    %c0_3 = arith.constant 0 : index
    %c0_4 = arith.constant 0 : index
    %3 = vector.load %arg4[%c0_3, %c0_4] : memref<1x128xf32, #tpu.memory_space<vmem>>, vector<1x128xf32>
    %4 = vector.broadcast %3 : vector<1x128xf32> to vector<16x128xf32>
    %5 = arith.addf %2, %4 : vector<16x128xf32>
    %cst_5 = arith.constant 0.000000e+00 : f32
    %6 = vector.broadcast %cst_5 : f32 to vector<16x128xf32>
    %7 = arith.maximumf %5, %6 : vector<16x128xf32>
    %8 = arith.truncf %7 : vector<16x128xf32> to vector<16x128xbf16>
    %c0_6 = arith.constant 0 : index
    %c0_7 = arith.constant 0 : index
    %9 = vector.load %arg5[%c0_6, %c0_7] : memref<128x128xbf16, #tpu.memory_space<vmem>>, vector<128x128xbf16>
    %cst_8 = arith.constant dense<0.000000e+00> : vector<16x128xf32>
    %10 = tpu.matmul %8, %9, %cst_8 {dimension_numbers = #tpu.dot_dimension_numbers<[1], [0], [0], [1], [0, 0, 1, 1], [], []>} : vector<16x128xbf16>, vector<128x128xbf16>, vector<16x128xf32> -> vector<16x128xf32>
    %c0_9 = arith.constant 0 : index
    %c0_10 = arith.constant 0 : index
    %11 = vector.load %arg6[%c0_9, %c0_10] : memref<1x128xf32, #tpu.memory_space<vmem>>, vector<1x128xf32>
    %12 = vector.broadcast %11 : vector<1x128xf32> to vector<16x128xf32>
    %13 = arith.addf %10, %12 : vector<16x128xf32>
    %cst_11 = arith.constant 0.000000e+00 : f32
    %14 = vector.broadcast %cst_11 : f32 to vector<16x128xf32>
    %15 = arith.maximumf %13, %14 : vector<16x128xf32>
    %16 = arith.truncf %15 : vector<16x128xf32> to vector<16x128xbf16>
    %c0_12 = arith.constant 0 : index
    %c0_13 = arith.constant 0 : index
    %17 = vector.load %arg7[%c0_12, %c0_13] : memref<128x256xbf16, #tpu.memory_space<vmem>>, vector<128x256xbf16>
    %cst_14 = arith.constant dense<0.000000e+00> : vector<16x256xf32>
    %18 = tpu.matmul %16, %17, %cst_14 {dimension_numbers = #tpu.dot_dimension_numbers<[1], [0], [0], [1], [0, 0, 1, 1], [], []>} : vector<16x128xbf16>, vector<128x256xbf16>, vector<16x256xf32> -> vector<16x256xf32>
    %c0_15 = arith.constant 0 : index
    %c0_16 = arith.constant 0 : index
    %19 = vector.load %arg8[%c0_15, %c0_16] : memref<1x256xf32, #tpu.memory_space<vmem>>, vector<1x256xf32>
    %20 = vector.broadcast %19 : vector<1x256xf32> to vector<16x256xf32>
    %21 = arith.addf %18, %20 : vector<16x256xf32>
    %22 = vector.extract_strided_slice %21 {offsets = [0, 0], sizes = [16, 128], strides = [1, 1]} : vector<16x256xf32> to vector<16x128xf32>
    %23 = vector.extract_strided_slice %21 {offsets = [0, 128], sizes = [16, 128], strides = [1, 1]} : vector<16x256xf32> to vector<16x128xf32>
    %24 = math.exp %23 : vector<16x128xf32>
    %c0_17 = arith.constant 0 : index
    %c0_18 = arith.constant 0 : index
    %25 = vector.load %arg2[%c0_17, %c0_18] : memref<16x128xf32, #tpu.memory_space<vmem>>, vector<16x128xf32>
    %26 = arith.mulf %25, %24 : vector<16x128xf32>
    %27 = arith.addf %26, %22 : vector<16x128xf32>
    %28 = tpu.iota {dimensions = array<i32: 0>} : vector<16x1xi32>
    %c16_i32 = arith.constant 16 : i32
    %29 = arith.muli %arg0, %c16_i32 : i32
    %30 = vector.broadcast %29 : i32 to vector<16x1xi32>
    %31 = arith.addi %28, %30 : vector<16x1xi32>
    %c2_i32 = arith.constant 2 : i32
    %32 = vector.broadcast %c2_i32 : i32 to vector<16x1xi32>
    %33 = arith.cmpi slt, %31, %32 : vector<16x1xi32>
    %34 = arith.mulf %22, %22 : vector<16x128xf32>
    %35 = arith.mulf %24, %24 : vector<16x128xf32>
    %36 = arith.addf %34, %35 : vector<16x128xf32>
    %cst_19 = arith.constant 2.000000e+00 : f32
    %37 = vector.broadcast %cst_19 : f32 to vector<16x128xf32>
    %38 = arith.mulf %37, %23 : vector<16x128xf32>
    %39 = arith.subf %36, %38 : vector<16x128xf32>
    %cst_20 = arith.constant 1.000000e+00 : f32
    %40 = vector.broadcast %cst_20 : f32 to vector<16x128xf32>
    %41 = arith.subf %39, %40 : vector<16x128xf32>
    %cst_21 = arith.constant 5.000000e-01 : f32
    %42 = vector.broadcast %cst_21 : f32 to vector<16x128xf32>
    %43 = arith.mulf %42, %41 : vector<16x128xf32>
    %cst_22 = arith.constant dense<0.000000e+00> : vector<16xf32>
    %44 = vector.multi_reduction <add>, %43, %cst_22 [1] : vector<16x128xf32> to vector<16xf32>
    %45 = vector.shape_cast %44 : vector<16xf32> to vector<16x1xf32>
    %cst_23 = arith.constant 0.000000e+00 : f32
    %46 = vector.broadcast %cst_23 : f32 to vector<16x1xf32>
    %47 = arith.select %33, %45, %46 : vector<16x1xi1>, vector<16x1xf32>
    %48 = vector.shape_cast %47 : vector<16x1xf32> to vector<1x16x1xf32>
    %cst_24 = arith.constant dense<0.000000e+00> : vector<1xf32>
    %49 = vector.multi_reduction <add>, %48, %cst_24 [1, 2] : vector<1x16x1xf32> to vector<1xf32>
    %50 = vector.shape_cast %49 : vector<1xf32> to vector<1x1x1xf32>
    %51 = vector.extract %50[0, 0, 0] : f32 from vector<1x1x1xf32>
    %52 = vector.broadcast %51 : f32 to vector<1x1x128xf32>
    %c0_25 = arith.constant 0 : index
    %c0_26 = arith.constant 0 : index
    %c0_27 = arith.constant 0 : index
    %53 = vector.load %arg14[%c0_25, %c0_26, %c0_27] : memref<1x1x128xf32, #tpu.memory_space<vmem>>, vector<1x1x128xf32>
    tpu.vector_store %arg14[%c0_25, %c0_26, %c0_27], %52 {strides = array<i32>} : memref<1x1x128xf32, #tpu.memory_space<vmem>>, vector<1x1x128xf32>,
    %54 = arith.truncf %27 : vector<16x128xf32> to vector<16x128xbf16>
    %c0_28 = arith.constant 0 : index
    %c0_29 = arith.constant 0 : index
    %55 = vector.load %arg9[%c0_28, %c0_29] : memref<128x128xbf16, #tpu.memory_space<vmem>>, vector<128x128xbf16>
    %cst_30 = arith.constant dense<0.000000e+00> : vector<16x128xf32>
    %56 = tpu.matmul %54, %55, %cst_30 {dimension_numbers = #tpu.dot_dimension_numbers<[1], [0], [0], [1], [0, 0, 1, 1], [], []>} : vector<16x128xbf16>, vector<128x128xbf16>, vector<16x128xf32> -> vector<16x128xf32>
    %c0_31 = arith.constant 0 : index
    %c0_32 = arith.constant 0 : index
    %57 = vector.load %arg10[%c0_31, %c0_32] : memref<1x128xf32, #tpu.memory_space<vmem>>, vector<1x128xf32>
    %58 = vector.broadcast %57 : vector<1x128xf32> to vector<16x128xf32>
    %59 = arith.addf %56, %58 : vector<16x128xf32>
    %cst_33 = arith.constant 0.000000e+00 : f32
    %60 = vector.broadcast %cst_33 : f32 to vector<16x128xf32>
    %61 = arith.maximumf %59, %60 : vector<16x128xf32>
    %62 = arith.truncf %61 : vector<16x128xf32> to vector<16x128xbf16>
    %c0_34 = arith.constant 0 : index
    %c0_35 = arith.constant 0 : index
    %63 = vector.load %arg11[%c0_34, %c0_35] : memref<128x16xbf16, #tpu.memory_space<vmem>>, vector<128x16xbf16>
    %cst_36 = arith.constant dense<0.000000e+00> : vector<16x16xf32>
    %64 = tpu.matmul %62, %63, %cst_36 {dimension_numbers = #tpu.dot_dimension_numbers<[1], [0], [0], [1], [0, 0, 1, 1], [], []>} : vector<16x128xbf16>, vector<128x16xbf16>, vector<16x16xf32> -> vector<16x16xf32>
    %c0_37 = arith.constant 0 : index
    %c0_38 = arith.constant 0 : index
    %65 = vector.load %arg12[%c0_37, %c0_38] : memref<1x16xf32, #tpu.memory_space<vmem>>, vector<1x16xf32>
    %66 = vector.broadcast %65 : vector<1x16xf32> to vector<16x16xf32>
    %67 = arith.addf %64, %66 : vector<16x16xf32>
    %c0_39 = arith.constant 0 : index
    %c0_40 = arith.constant 0 : index
    %68 = vector.load %arg13[%c0_39, %c0_40] : memref<16x16xf32, #tpu.memory_space<vmem>>, vector<16x16xf32>
    tpu.vector_store %arg13[%c0_39, %c0_40], %67 {strides = array<i32>} : memref<16x16xf32, #tpu.memory_space<vmem>>, vector<16x16xf32>,
    return
  }
  func.func @transform_0(%arg0: i32) -> (i32, i32) {
    %c0_i32 = arith.constant 0 : i32
    %c0_i32_0 = arith.constant 0 : i32
    return %arg0, %c0_i32 : i32, i32
  }
  func.func @transform_1(%arg0: i32) -> (i32, i32) {
    %c0_i32 = arith.constant 0 : i32
    %c0_i32_0 = arith.constant 0 : i32
    return %arg0, %c0_i32 : i32, i32
  }
  func.func @transform_2(%arg0: i32) -> (i32, i32) {
    %c0_i32 = arith.constant 0 : i32
    %c0_i32_0 = arith.constant 0 : i32
    %c0_i32_1 = arith.constant 0 : i32
    return %c0_i32, %c0_i32_0 : i32, i32
  }
  func.func @transform_3(%arg0: i32) -> (i32, i32) {
    %c0_i32 = arith.constant 0 : i32
    %c0_i32_0 = arith.constant 0 : i32
    %c0_i32_1 = arith.constant 0 : i32
    return %c0_i32, %c0_i32_0 : i32, i32
  }
  func.func @transform_4(%arg0: i32) -> (i32, i32) {
    %c0_i32 = arith.constant 0 : i32
    %c0_i32_0 = arith.constant 0 : i32
    %c0_i32_1 = arith.constant 0 : i32
    return %c0_i32, %c0_i32_0 : i32, i32
  }
  func.func @transform_5(%arg0: i32) -> (i32, i32) {
    %c0_i32 = arith.constant 0 : i32
    %c0_i32_0 = arith.constant 0 : i32
    %c0_i32_1 = arith.constant 0 : i32
    return %c0_i32, %c0_i32_0 : i32, i32
  }
  func.func @transform_6(%arg0: i32) -> (i32, i32) {
    %c0_i32 = arith.constant 0 : i32
    %c0_i32_0 = arith.constant 0 : i32
    %c0_i32_1 = arith.constant 0 : i32
    return %c0_i32, %c0_i32_0 : i32, i32
  }
  func.func @transform_7(%arg0: i32) -> (i32, i32) {
    %c0_i32 = arith.constant 0 : i32
    %c0_i32_0 = arith.constant 0 : i32
    %c0_i32_1 = arith.constant 0 : i32
    return %c0_i32, %c0_i32_0 : i32, i32
  }
  func.func @transform_8(%arg0: i32) -> (i32, i32) {
    %c0_i32 = arith.constant 0 : i32
    %c0_i32_0 = arith.constant 0 : i32
    %c0_i32_1 = arith.constant 0 : i32
    return %c0_i32, %c0_i32_0 : i32, i32
  }
  func.func @transform_9(%arg0: i32) -> (i32, i32) {
    %c0_i32 = arith.constant 0 : i32
    %c0_i32_0 = arith.constant 0 : i32
    %c0_i32_1 = arith.constant 0 : i32
    return %c0_i32, %c0_i32_0 : i32, i32
  }
  func.func @transform_10(%arg0: i32) -> (i32, i32) {
    %c0_i32 = arith.constant 0 : i32
    %c0_i32_0 = arith.constant 0 : i32
    %c0_i32_1 = arith.constant 0 : i32
    return %c0_i32, %c0_i32_0 : i32, i32
  }
  func.func @transform_11(%arg0: i32) -> (i32, i32) {
    %c0_i32 = arith.constant 0 : i32
    %c0_i32_0 = arith.constant 0 : i32
    %c0_i32_1 = arith.constant 0 : i32
    return %c0_i32, %c0_i32_0 : i32, i32
  }
  func.func @transform_12(%arg0: i32) -> (i32, i32) {
    %c0_i32 = arith.constant 0 : i32
    %c0_i32_0 = arith.constant 0 : i32
    return %arg0, %c0_i32 : i32, i32
  }
  func.func @transform_13(%arg0: i32) -> (i32, i32, i32) {
    %c0_i32 = arith.constant 0 : i32
    %c0_i32_0 = arith.constant 0 : i32
    %c0_i32_1 = arith.constant 0 : i32
    return %arg0, %c0_i32, %c0_i32_0 : i32, i32, i32
  }
}

</mosaic_0001>

<llo_original>
// kernel: tpu_custom_call.1
$region0: #{tpu_custom_call.1}
  #allocation0 [shape = 'u32[]', space=smem, size = 0x4, offset = 0x4, fixed_abs, tag = 'smem constant byte address 0x4 - core index']
  #allocation1 [shape = 'u32[144,128]{1,0:T(1,128)}', space=vmem, size = 0x12000, scoped, tag = 'internal scratch']
  %s0 = inlined_call_operand.hbm [shape: bf16[16,16], index: 0, kind: input, shape index: {}]
  %s1 = inlined_call_operand.vmem [shape: f32[16,128], index: 1, kind: input, shape index: {}]
  %s2 = inlined_call_operand.hbm [shape: bf16[16,128], index: 2, kind: input, shape index: {}]
  %s3 = inlined_call_operand.hbm [shape: f32[1,128], index: 3, kind: input, shape index: {}]
  %s4 = inlined_call_operand.vmem [shape: bf16[128,128], index: 4, kind: input, shape index: {}]
  %s5 = inlined_call_operand.hbm [shape: f32[1,128], index: 5, kind: input, shape index: {}]
  %s6 = inlined_call_operand.hbm [shape: bf16[128,256], index: 6, kind: input, shape index: {}]
  %s7 = inlined_call_operand.vmem [shape: f32[1,256], index: 7, kind: input, shape index: {}]
  %s8 = inlined_call_operand.hbm [shape: bf16[128,128], index: 8, kind: input, shape index: {}]
  %s9 = inlined_call_operand.vmem [shape: f32[1,128], index: 9, kind: input, shape index: {}]
  %s10 = inlined_call_operand.vmem [shape: bf16[128,16], index: 10, kind: input, shape index: {}]
  %s11 = inlined_call_operand.vmem [shape: f32[1,16], index: 11, kind: input, shape index: {}]
  %s12 = inlined_call_operand.hbm [shape: f32[16,16], index: 12, kind: output, shape index: {0}]
  %s13 = inlined_call_operand.hbm [shape: f32[1,1,128], index: 13, kind: output, shape index: {1}]
  %14 = xla_tuple %s12, %s13
  %s15 = sld [smem:[#allocation0]]
  $region90: #{tpu_custom_call.1} parent=0
    _
  %s17 = ssub.s32 1, %s15
  %s18 = scalar_select 0, %s17, %s15
  $region1: #{tpu_custom_call.1} parent=0
    #allocation2 [shape = 'u8[4096]{0}', space=vmem, size = 0x1000, scoped, tag = 'input window, operand 0, single buffered']
    #allocation3 [shape = 's32[1]{0}', space=sflag, size = 0x4, scoped, tag = 'scoped memory for tpu_custom_call.1']
    #allocation4 [shape = 's32[1]{0}', space=sflag, size = 0x4, scoped, tag = 'scoped memory for tpu_custom_call.1']
    #allocation5 [shape = 'u8[4096]{0}', space=vmem, size = 0x1000, scoped, tag = 'input window, operand 2, single buffered']
    #allocation6 [shape = 's32[1]{0}', space=sflag, size = 0x4, scoped, tag = 'scoped memory for tpu_custom_call.1']
    #allocation7 [shape = 'u8[512]{0}', space=vmem, size = 0x400, scoped, tag = 'input window, operand 3, single buffered']
    #allocation8 [shape = 'u8[512]{0}', space=vmem, size = 0x400, scoped, tag = 'input window, operand 5, single buffered']
    #allocation9 [shape = 's32[1]{0}', space=sflag, size = 0x4, scoped, tag = 'scoped memory for tpu_custom_call.1']
    #allocation10 [shape = 'u8[65536]{0}', space=vmem, size = 0x10000, scoped, tag = 'input window, operand 6, single buffered']
    #allocation11 [shape = 'u8[32768]{0}', space=vmem, size = 0x8000, scoped, tag = 'input window, operand 8, single buffered']
    #allocation12 [shape = 's32[1]{0}', space=sflag, size = 0x4, scoped, tag = 'scoped memory for tpu_custom_call.1']
    #allocation13 [shape = 'u8[8192]{0}', space=vmem, size = 0x2000, scoped, tag = 'output window, operand 0, single buffered']
    #allocation14 [shape = 'u8[512]{0}', space=vmem, size = 0x400, scoped, tag = 'output window, operand 1, single buffered']
    #allocation15 [shape = 's32[1]{0}', space=sflag, size = 0x4, scoped, tag = 'scoped memory for tpu_custom_call.1']
    %19 = vsyncpa [#allocation3], 0
    %20 = vsyncpa [#allocation6], 0
    %21 = vsyncpa [#allocation9], 0
    %22 = vsyncpa [#allocation12], 0
    %23 = vsyncpa [#allocation4], 0
    %24 = vsyncpa [#allocation15], 0
    // Predicated region
    $region2: #{tpu_custom_call.1} parent=1 // pred_check
      _
    $region3: #{tpu_custom_call.1} parent=1 // pred_check_branch
      %26 = sbr.rel (0) target = $region5
    $region4: #{tpu_custom_call.1} parent=1 // pred_region
      %s28 = ssub.s32 128, 128
      %29 = vsyncadd [#allocation3], %s28
      %s30 = sshll.u32 [#allocation2], 4
      %s31 = int_to_ptr.vmem [resolvable:$true] %s30
      %36 = dma.hbm_to_vmem [thread:$0]  %s0, 128, %s31, [#allocation3], 64, 64, 4
    $region5: #{tpu_custom_call.1} parent=1 // pred_fallthru
      _
    // Predicated region
    $region6: #{tpu_custom_call.1} parent=1 // pred_check
      _
    $region7: #{tpu_custom_call.1} parent=1 // pred_check_branch
      %38 = sbr.rel (0) target = $region9
    $region8: #{tpu_custom_call.1} parent=1 // pred_region
      _
    $region9: #{tpu_custom_call.1} parent=1 // pred_fallthru
      _
    // Predicated region
    $region10: #{tpu_custom_call.1} parent=1 // pred_check
      _
    $region11: #{tpu_custom_call.1} parent=1 // pred_check_branch
      %40 = sbr.rel (0) target = $region13
    $region12: #{tpu_custom_call.1} parent=1 // pred_region
      %s42 = ssub.s32 128, 128
      %43 = vsyncadd [#allocation6], %s42
      %s44 = sshll.u32 [#allocation5], 4
      %s45 = int_to_ptr.vmem [resolvable:$true] %s44
      %50 = dma.hbm_to_vmem [thread:$0]  %s2, 128, %s45, [#allocation6], 64, 64, 4
    $region13: #{tpu_custom_call.1} parent=1 // pred_fallthru
      _
    // Predicated region
    $region14: #{tpu_custom_call.1} parent=1 // pred_check
      _
    $region15: #{tpu_custom_call.1} parent=1 // pred_check_branch
      %52 = sbr.rel (0) target = $region17
    $region16: #{tpu_custom_call.1} parent=1 // pred_region
      %s54 = ssub.s32 16, 16
      %55 = vsyncadd [#allocation6], %s54
      %s57 = sshll.u32 [#allocation7], 4
      %s58 = int_to_ptr.vmem [resolvable:$true] %s57
      %60 = dma.hbm_to_vmem [thread:$0]  %s3, 16, %s58, [#allocation6]
    $region17: #{tpu_custom_call.1} parent=1 // pred_fallthru
      _
    // Predicated region
    $region18: #{tpu_custom_call.1} parent=1 // pred_check
      _
    $region19: #{tpu_custom_call.1} parent=1 // pred_check_branch
      %62 = sbr.rel (0) target = $region21
    $region20: #{tpu_custom_call.1} parent=1 // pred_region
      _
    $region21: #{tpu_custom_call.1} parent=1 // pred_fallthru
      _
    // Predicated region
    $region22: #{tpu_custom_call.1} parent=1 // pred_check
      _
    $region23: #{tpu_custom_call.1} parent=1 // pred_check_branch
      %64 = sbr.rel (0) target = $region25
    $region24: #{tpu_custom_call.1} parent=1 // pred_region
      %s66 = ssub.s32 16, 16
      %67 = vsyncadd [#allocation9], %s66
      %s69 = sshll.u32 [#allocation8], 4
      %s70 = int_to_ptr.vmem [resolvable:$true] %s69
      %72 = dma.hbm_to_vmem [thread:$0]  %s5, 16, %s70, [#allocation9]
    $region25: #{tpu_custom_call.1} parent=1 // pred_fallthru
      _
    // Predicated region
    $region26: #{tpu_custom_call.1} parent=1 // pred_check
      _
    $region27: #{tpu_custom_call.1} parent=1 // pred_check_branch
      %74 = sbr.rel (0) target = $region29
    $region28: #{tpu_custom_call.1} parent=1 // pred_region
      %s76 = ssub.s32 2048, 2048
      %77 = vsyncadd [#allocation9], %s76
      %s78 = sshll.u32 [#allocation10], 4
      %s79 = int_to_ptr.vmem [resolvable:$true] %s78
      %84 = dma.hbm_to_vmem [thread:$0]  %s6, 2048, %s79, [#allocation9], 128, 128, 8
    $region29: #{tpu_custom_call.1} parent=1 // pred_fallthru
      _
    // Predicated region
    $region30: #{tpu_custom_call.1} parent=1 // pred_check
      _
    $region31: #{tpu_custom_call.1} parent=1 // pred_check_branch
      %86 = sbr.rel (0) target = $region33
    $region32: #{tpu_custom_call.1} parent=1 // pred_region
      _
    $region33: #{tpu_custom_call.1} parent=1 // pred_fallthru
      _
    // Predicated region
    $region34: #{tpu_custom_call.1} parent=1 // pred_check
      _
    $region35: #{tpu_custom_call.1} parent=1 // pred_check_branch
      %88 = sbr.rel (0) target = $region37
    $region36: #{tpu_custom_call.1} parent=1 // pred_region
      %s90 = ssub.s32 1024, 1024
      %91 = vsyncadd [#allocation12], %s90
      %s92 = sshll.u32 [#allocation11], 4
      %s93 = int_to_ptr.vmem [resolvable:$true] %s92
      %98 = dma.hbm_to_vmem [thread:$0]  %s8, 1024, %s93, [#allocation12], 64, 64, 4
    $region37: #{tpu_custom_call.1} parent=1 // pred_fallthru
      _
    // Predicated region
    $region38: #{tpu_custom_call.1} parent=1 // pred_check
      _
    $region39: #{tpu_custom_call.1} parent=1 // pred_check_branch
      %100 = sbr.rel (0) target = $region41
    $region40: #{tpu_custom_call.1} parent=1 // pred_region
      _
    $region41: #{tpu_custom_call.1} parent=1 // pred_fallthru
      _
    // Predicated region
    $region42: #{tpu_custom_call.1} parent=1 // pred_check
      _
    $region43: #{tpu_custom_call.1} parent=1 // pred_check_branch
      %102 = sbr.rel (0) target = $region45
    $region44: #{tpu_custom_call.1} parent=1 // pred_region
      _
    $region45: #{tpu_custom_call.1} parent=1 // pred_fallthru
      _
    // Predicated region
    $region46: #{tpu_custom_call.1} parent=1 // pred_check
      _
    $region47: #{tpu_custom_call.1} parent=1 // pred_check_branch
      %104 = sbr.rel (0) target = $region49
    $region48: #{tpu_custom_call.1} parent=1 // pred_region
      _
    $region49: #{tpu_custom_call.1} parent=1 // pred_fallthru
      _
    // Predicated region
    $region50: #{tpu_custom_call.1} parent=1 // pred_check
      _
    $region51: #{tpu_custom_call.1} parent=1 // pred_check_branch
      %106 = sbr.rel (0) target = $region53
    $region52: #{tpu_custom_call.1} parent=1 // pred_region
      %107 = dma.done [#allocation3], 128
    $region53: #{tpu_custom_call.1} parent=1 // pred_fallthru
      _
    // Predicated region
    $region54: #{tpu_custom_call.1} parent=1 // pred_check
      _
    $region55: #{tpu_custom_call.1} parent=1 // pred_check_branch
      %109 = sbr.rel (0) target = $region57
    $region56: #{tpu_custom_call.1} parent=1 // pred_region
      %110 = dma.done [#allocation6], 128
    $region57: #{tpu_custom_call.1} parent=1 // pred_fallthru
      _
    // Predicated region
    $region58: #{tpu_custom_call.1} parent=1 // pred_check
      _
    $region59: #{tpu_custom_call.1} parent=1 // pred_check_branch
      %112 = sbr.rel (0) target = $region61
    $region60: #{tpu_custom_call.1} parent=1 // pred_region
      %113 = dma.done [#allocation6], 16
    $region61: #{tpu_custom_call.1} parent=1 // pred_fallthru
      _
    // Predicated region
    $region62: #{tpu_custom_call.1} parent=1 // pred_check
      _
    $region63: #{tpu_custom_call.1} parent=1 // pred_check_branch
      %115 = sbr.rel (0) target = $region65
    $region64: #{tpu_custom_call.1} parent=1 // pred_region
      %116 = dma.done [#allocation9], 16
    $region65: #{tpu_custom_call.1} parent=1 // pred_fallthru
      _
    // Predicated region
    $region66: #{tpu_custom_call.1} parent=1 // pred_check
      _
    $region67: #{tpu_custom_call.1} parent=1 // pred_check_branch
      %118 = sbr.rel (0) target = $region69
    $region68: #{tpu_custom_call.1} parent=1 // pred_region
      %119 = dma.done [#allocation9], 2048
    $region69: #{tpu_custom_call.1} parent=1 // pred_fallthru
      _
    // Predicated region
    $region70: #{tpu_custom_call.1} parent=1 // pred_check
      _
    $region71: #{tpu_custom_call.1} parent=1 // pred_check_branch
      %121 = sbr.rel (0) target = $region73
    $region72: #{tpu_custom_call.1} parent=1 // pred_region
      %122 = dma.done [#allocation12], 1024
    $region73: #{tpu_custom_call.1} parent=1 // pred_fallthru
      _
    %v124 = vld [vmem:[#allocation2] sm:$0xf]
    %v125 = vld [vmem:[#allocation2 + $0x4] sm:$0xf]
    %v126 = vld [vmem:[#allocation5] sm:$0xf]
    %v127 = vld [vmem:[#allocation5 + $0x4] sm:$0xf]
    %v128 = vld [vmem:[#allocation7] sm:$0x1]
    %v130 = vlaneseq
    %v131 = vshrl.u32 %v130, 7
    %v132 = vsub.s32 0, %v131
    %v133 = vrot.slane %v128, %v132
    %v137 = vunpack.c.l.b16 %v124
    %v138 = vunpack.c.l.b16 %v125
    %v139 = vpack.c.b16 %v138, %v137
    %v142 = vunpack.c.l.b16 %v126
    %v143 = vunpack.c.l.b16 %v127
    %v144 = vpack.c.b16 %v143, %v142
    %vm146 = vcmask 130048
    %v148 = vsel %vm146, %v139, 0
    %150 = vmatprep.subr.bf16.mxu0 0
    %151 = vmatpush1.bf16.msra.mxu0 %v144
    %152 = vmatprep.subr.bf16.mxu0 0
    %153 = vmatpush1.bf16.msra.mxu0 0
    %154 = vmatprep.subr.bf16.mxu0 0
    %155 = vmatpush1.bf16.msra.mxu0 0
    %156 = vmatprep.subr.bf16.mxu0 0
    %157 = vmatpush1.bf16.msra.mxu0 0
    %158 = vmatprep.subr.bf16.mxu0 0
    %159 = vmatpush1.bf16.msra.mxu0 0
    %160 = vmatprep.subr.bf16.mxu0 0
    %161 = vmatpush1.bf16.msra.mxu0 0
    %162 = vmatprep.subr.bf16.mxu0 0
    %163 = vmatpush1.bf16.msra.mxu0 0
    %164 = vmatprep.subr.bf16.mxu0 0
    %165 = vmatpush1.bf16.msra.mxu0 0
    %166 = vmatprep.subr.bf16.mxu0 0
    %167 = vmatpush1.bf16.msra.mxu0 0
    %168 = vmatprep.subr.bf16.mxu0 0
    %169 = vmatpush1.bf16.msra.mxu0 0
    %170 = vmatprep.subr.bf16.mxu0 0
    %171 = vmatpush1.bf16.msra.mxu0 0
    %172 = vmatprep.subr.bf16.mxu0 0
    %173 = vmatpush1.bf16.msra.mxu0 0
    %174 = vmatprep.subr.bf16.mxu0 0
    %175 = vmatpush1.bf16.msra.mxu0 0
    %176 = vmatprep.subr.bf16.mxu0 0
    %177 = vmatpush1.bf16.msra.mxu0 0
    %178 = vmatprep.subr.bf16.mxu0 0
    %179 = vmatpush1.bf16.msra.mxu0 0
    %180 = vmatprep.subr.bf16.mxu0 0
    %181 = vmatpush1.bf16.msra.mxu0 0
    %182 = vmatprep.mubr.bf16.mxu0 0
    %183 = vmatmul.mubr.bf16.gmra.mrb[0].mxu0 %v148
    %v184 = vpop.f32.mrb[0].mxu0
    %v185 = vadd.f32 %v133, %v184
    %v186 = vpop.f32.mrb[0].mxu0
    %v187 = vpop.f32.mrb[0].mxu0
    %v188 = vadd.f32 %v133, %v187
    %v189 = vpop.f32.mrb[0].mxu0
    %190 = vdwg.mxu0
    %v191 = vmax.f32 %v185, 0.0
    %v192 = vmax.f32 %v188, 0.0
    %v193 = vpack.c.bf16 %v192, %v191
    %v194 = vld [vmem:[%s4] sm:$0xf]
    %v195 = vld [vmem:[%s4 + $0x4] sm:$0xf]
    %v196 = vld [vmem:[%s4 + $0x8] sm:$0xf]
    %v197 = vld [vmem:[%s4 + $0xc] sm:$0xf]
    %v198 = vld [vmem:[%s4 + $0x10] sm:$0xf]
    %v199 = vld [vmem:[%s4 + $0x14] sm:$0xf]
    %v200 = vld [vmem:[%s4 + $0x18] sm:$0xf]
    %v201 = vld [vmem:[%s4 + $0x1c] sm:$0xf]
    %v202 = vld [vmem:[%s4 + $0x20] sm:$0xf]
    %v203 = vld [vmem:[%s4 + $0x24] sm:$0xf]
    %v204 = vld [vmem:[%s4 + $0x28] sm:$0xf]
    %v205 = vld [vmem:[%s4 + $0x2c] sm:$0xf]
    %v206 = vld [vmem:[%s4 + $0x30] sm:$0xf]
    %v207 = vld [vmem:[%s4 + $0x34] sm:$0xf]
    %v208 = vld [vmem:[%s4 + $0x38] sm:$0xf]
    %v209 = vld [vmem:[%s4 + $0x3c] sm:$0xf]
    %v210 = vld [vmem:[#allocation8] sm:$0x1]
    %v212 = vlaneseq
    %v213 = vshrl.u32 %v212, 7
    %v214 = vsub.s32 0, %v213
    %v215 = vrot.slane %v210, %v214
    %v233 = vunpack.c.l.b16 %v194
    %v234 = vunpack.c.l.b16 %v195
    %v235 = vunpack.c.l.b16 %v196
    %v236 = vunpack.c.l.b16 %v197
    %v237 = vunpack.c.l.b16 %v198
    %v238 = vunpack.c.l.b16 %v199
    %v239 = vunpack.c.l.b16 %v200
    %v240 = vunpack.c.l.b16 %v201
    %v241 = vunpack.c.l.b16 %v202
    %v242 = vunpack.c.l.b16 %v203
    %v243 = vunpack.c.l.b16 %v204
    %v244 = vunpack.c.l.b16 %v205
    %v245 = vunpack.c.l.b16 %v206
    %v246 = vunpack.c.l.b16 %v207
    %v247 = vunpack.c.l.b16 %v208
    %v248 = vunpack.c.l.b16 %v209
    %v249 = vpack.c.b16 %v234, %v233
    %v250 = vpack.c.b16 %v236, %v235
    %v251 = vpack.c.b16 %v238, %v237
    %v252 = vpack.c.b16 %v240, %v239
    %v253 = vpack.c.b16 %v242, %v241
    %v254 = vpack.c.b16 %v244, %v243
    %v255 = vpack.c.b16 %v246, %v245
    %v256 = vpack.c.b16 %v248, %v247
    %265 = vmatprep.subr.bf16.mxu0 0
    %266 = vmatpush1.bf16.msra.mxu0 %v249
    %267 = vmatprep.subr.bf16.mxu0 0
    %268 = vmatpush1.bf16.msra.mxu0 %v250
    %269 = vmatprep.subr.bf16.mxu0 0
    %270 = vmatpush1.bf16.msra.mxu0 %v251
    %271 = vmatprep.subr.bf16.mxu0 0
    %272 = vmatpush1.bf16.msra.mxu0 %v252
    %273 = vmatprep.subr.bf16.mxu0 0
    %274 = vmatpush1.bf16.msra.mxu0 %v253
    %275 = vmatprep.subr.bf16.mxu0 0
    %276 = vmatpush1.bf16.msra.mxu0 %v254
    %277 = vmatprep.subr.bf16.mxu0 0
    %278 = vmatpush1.bf16.msra.mxu0 %v255
    %279 = vmatprep.subr.bf16.mxu0 0
    %280 = vmatpush1.bf16.msra.mxu0 %v256
    %281 = vmatprep.subr.bf16.mxu0 0
    %282 = vmatpush1.bf16.msra.mxu0 0
    %283 = vmatprep.subr.bf16.mxu0 0
    %284 = vmatpush1.bf16.msra.mxu0 0
    %285 = vmatprep.subr.bf16.mxu0 0
    %286 = vmatpush1.bf16.msra.mxu0 0
    %287 = vmatprep.subr.bf16.mxu0 0
    %288 = vmatpush1.bf16.msra.mxu0 0
    %289 = vmatprep.subr.bf16.mxu0 0
    %290 = vmatpush1.bf16.msra.mxu0 0
    %291 = vmatprep.subr.bf16.mxu0 0
    %292 = vmatpush1.bf16.msra.mxu0 0
    %293 = vmatprep.subr.bf16.mxu0 0
    %294 = vmatpush1.bf16.msra.mxu0 0
    %295 = vmatprep.subr.bf16.mxu0 0
    %296 = vmatpush1.bf16.msra.mxu0 0
    %297 = vmatprep.mubr.bf16.mxu0 0
    %298 = vmatmul.mubr.bf16.gmra.mrb[0].mxu0 %v193
    %v299 = vpop.f32.mrb[0].mxu0
    %v300 = vadd.f32 %v215, %v299
    %v301 = vpop.f32.mrb[0].mxu0
    %v302 = vpop.f32.mrb[0].mxu0
    %v303 = vadd.f32 %v215, %v302
    %v304 = vpop.f32.mrb[0].mxu0
    %305 = vdwg.mxu0
    %v306 = vmax.f32 %v300, 0.0
    %v307 = vmax.f32 %v303, 0.0
    %v308 = vpack.c.bf16 %v307, %v306
    %v309 = vld [vmem:[#allocation10] sm:$0xff]
    %v310 = vld [vmem:[#allocation10 + $0x8] sm:$0xff]
    %v311 = vld [vmem:[#allocation10 + $0x10] sm:$0xff]
    %v312 = vld [vmem:[#allocation10 + $0x18] sm:$0xff]
    %v313 = vld [vmem:[#allocation10 + $0x20] sm:$0xff]
    %v314 = vld [vmem:[#allocation10 + $0x28] sm:$0xff]
    %v315 = vld [vmem:[#allocation10 + $0x30] sm:$0xff]
    %v316 = vld [vmem:[#allocation10 + $0x38] sm:$0xff]
    %v317 = vld [vmem:[#allocation10 + $0x40] sm:$0xff]
    %v318 = vld [vmem:[#allocation10 + $0x48] sm:$0xff]
    %v319 = vld [vmem:[#allocation10 + $0x50] sm:$0xff]
    %v320 = vld [vmem:[#allocation10 + $0x58] sm:$0xff]
    %v321 = vld [vmem:[#allocation10 + $0x60] sm:$0xff]
    %v322 = vld [vmem:[#allocation10 + $0x68] sm:$0xff]
    %v323 = vld [vmem:[#allocation10 + $0x70] sm:$0xff]
    %v324 = vld [vmem:[#allocation10 + $0x78] sm:$0xff]
    %v325 = vld [vmem:[%s7] sm:$0x3]
    %v327 = vlaneseq
    %v328 = vshrl.u32 %v327, 7
    %v329 = vsub.s32 0, %v328
    %v330 = vrot.slane %v325, %v329
    %v331 = vlaneseq
    %v332 = vshrl.u32 %v331, 7
    %v333 = vsub.s32 1, %v332
    %v334 = vrot.slane %v325, %v333
    %v353 = vunpack.c.l.b16 %v309
    %v354 = vunpack.c.h.b16 %v309
    %v355 = vunpack.c.l.b16 %v310
    %v356 = vunpack.c.h.b16 %v310
    %v357 = vunpack.c.l.b16 %v311
    %v358 = vunpack.c.h.b16 %v311
    %v359 = vunpack.c.l.b16 %v312
    %v360 = vunpack.c.h.b16 %v312
    %v361 = vunpack.c.l.b16 %v313
    %v362 = vunpack.c.h.b16 %v313
    %v363 = vunpack.c.l.b16 %v314
    %v364 = vunpack.c.h.b16 %v314
    %v365 = vunpack.c.l.b16 %v315
    %v366 = vunpack.c.h.b16 %v315
    %v367 = vunpack.c.l.b16 %v316
    %v368 = vunpack.c.h.b16 %v316
    %v369 = vunpack.c.l.b16 %v317
    %v370 = vunpack.c.h.b16 %v317
    %v371 = vunpack.c.l.b16 %v318
    %v372 = vunpack.c.h.b16 %v318
    %v373 = vunpack.c.l.b16 %v319
    %v374 = vunpack.c.h.b16 %v319
    %v375 = vunpack.c.l.b16 %v320
    %v376 = vunpack.c.h.b16 %v320
    %v377 = vunpack.c.l.b16 %v321
    %v378 = vunpack.c.h.b16 %v321
    %v379 = vunpack.c.l.b16 %v322
    %v380 = vunpack.c.h.b16 %v322
    %v381 = vunpack.c.l.b16 %v323
    %v382 = vunpack.c.h.b16 %v323
    %v383 = vunpack.c.l.b16 %v324
    %v384 = vunpack.c.h.b16 %v324
    %v385 = vpack.c.b16 %v355, %v353
    %v386 = vpack.c.b16 %v356, %v354
    %v387 = vpack.c.b16 %v359, %v357
    %v388 = vpack.c.b16 %v360, %v358
    %v389 = vpack.c.b16 %v363, %v361
    %v390 = vpack.c.b16 %v364, %v362
    %v391 = vpack.c.b16 %v367, %v365
    %v392 = vpack.c.b16 %v368, %v366
    %v393 = vpack.c.b16 %v371, %v369
    %v394 = vpack.c.b16 %v372, %v370
    %v395 = vpack.c.b16 %v375, %v373
    %v396 = vpack.c.b16 %v376, %v374
    %v397 = vpack.c.b16 %v379, %v377
    %v398 = vpack.c.b16 %v380, %v378
    %v399 = vpack.c.b16 %v383, %v381
    %v400 = vpack.c.b16 %v384, %v382
    %417 = vmatprep.subr.bf16.mxu0 %v386
    %418 = vmatpush1.bf16.msra.mxu0 %v385
    %419 = vmatprep.subr.bf16.mxu0 %v388
    %420 = vmatpush1.bf16.msra.mxu0 %v387
    %421 = vmatprep.subr.bf16.mxu0 %v390
    %422 = vmatpush1.bf16.msra.mxu0 %v389
    %423 = vmatprep.subr.bf16.mxu0 %v392
    %424 = vmatpush1.bf16.msra.mxu0 %v391
    %425 = vmatprep.subr.bf16.mxu0 %v394
    %426 = vmatpush1.bf16.msra.mxu0 %v393
    %427 = vmatprep.subr.bf16.mxu0 %v396
    %428 = vmatpush1.bf16.msra.mxu0 %v395
    %429 = vmatprep.subr.bf16.mxu0 %v398
    %430 = vmatpush1.bf16.msra.mxu0 %v397
    %431 = vmatprep.subr.bf16.mxu0 %v400
    %432 = vmatpush1.bf16.msra.mxu0 %v399
    %433 = vmatprep.subr.bf16.mxu0 0
    %434 = vmatpush1.bf16.msra.mxu0 0
    %435 = vmatprep.subr.bf16.mxu0 0
    %436 = vmatpush1.bf16.msra.mxu0 0
    %437 = vmatprep.subr.bf16.mxu0 0
    %438 = vmatpush1.bf16.msra.mxu0 0
    %439 = vmatprep.subr.bf16.mxu0 0
    %440 = vmatpush1.bf16.msra.mxu0 0
    %441 = vmatprep.subr.bf16.mxu0 0
    %442 = vmatpush1.bf16.msra.mxu0 0
    %443 = vmatprep.subr.bf16.mxu0 0
    %444 = vmatpush1.bf16.msra.mxu0 0
    %445 = vmatprep.subr.bf16.mxu0 0
    %446 = vmatpush1.bf16.msra.mxu0 0
    %447 = vmatprep.subr.bf16.mxu0 0
    %448 = vmatpush1.bf16.msra.mxu0 0
    %449 = vmatprep.mubr.bf16.mxu0 0
    %450 = vmatmul.mubr.bf16.gmra.mrb[0].mxu0 %v308
    %v451 = vpop.f32.mrb[0].mxu0
    %v452 = vadd.f32 %v330, %v451
    %v453 = vpop.f32.mrb[0].mxu0
    %v454 = vadd.f32 %v334, %v453
    %v455 = vpop.f32.mrb[0].mxu0
    %v456 = vadd.f32 %v330, %v455
    %v457 = vpop.f32.mrb[0].mxu0
    %v458 = vadd.f32 %v334, %v457
    %459 = vdwg.mxu0
    %v460 = vmul.f32 %v454, 1.442695
    %v461 = vpow.pop %v460
    %v462 = vmul.f32 %v458, 1.442695
    %v463 = vpow.pop %v462
    %v464 = vld [vmem:[%s1] sm:$0xff]
    %v465 = vld [vmem:[%s1 + $0x8] sm:$0xff]
    %v466 = vmul.f32 %v464, %v461
    %v467 = vmul.f32 %v465, %v463
    %v468 = vadd.f32 %v466, %v452
    %v469 = vadd.f32 %v467, %v456
    %v470 = vlaneseq
    %v471 = vshrl.u32 %v470, 7
    %v472 = vadd.s32 %v471, 8
    %s473 = smul.u32 0, 16
    %v474 = vstv %s473
    %v475 = vadd.s32 %v471, %v474
    %v476 = vadd.s32 %v472, %v474
    %vm477 = vcmp.lt.s32.totalorder %v475, 2
    %vm478 = vcmp.lt.s32.totalorder %v476, 2
    %v479 = vmul.f32 %v452, %v452
    %v480 = vmul.f32 %v456, %v456
    %v481 = vmul.f32 %v461, %v461
    %v482 = vmul.f32 %v463, %v463
    %v483 = vadd.f32 %v479, %v481
    %v484 = vadd.f32 %v480, %v482
    %v485 = vmul.f32 %v454, 2.0
    %v486 = vmul.f32 %v458, 2.0
    %v487 = vsub.f32 %v483, %v485
    %v488 = vsub.f32 %v484, %v486
    %v489 = vsub.f32 %v487, 1.0
    %v490 = vsub.f32 %v488, 1.0
    %v491 = vmul.f32 %v489, 0.5
    %v492 = vmul.f32 %v490, 0.5
    %493 = vadd.xlane.f32.xlu0 %v491
    %v494 = vpop.xlane.xlu0 %493
    %495 = vadd.xlane.f32.xlu0 %v492
    %v496 = vpop.xlane.xlu0 %495
    %v497 = vsel %vm477, %v494, 0.0
    %v498 = vsel %vm478, %v496, 0.0
    %vm499 = vcmask 7168
    %v500 = vsel %vm499, %v497, 0.0
    %v501 = vsel %vm499, %v498, 0.0
    %v502 = vadd.f32 %v500, %v501
    %503 = vadd.xlane.f32.xlu0 %v502
    %v504 = vpop.xlane.xlu0 %503
    %v505 = vrot.slane %v504, 4
    %v506 = vadd.f32 %v504, %v505
    %v507 = vrot.slane %v506, 2
    %v508 = vadd.f32 %v506, %v507
    %v509 = vrot.slane %v508, 1
    %v510 = vadd.f32 %v508, %v509
    %s511 = vtos %v510
    %v512 = vstv %s511
    %513 = vst [vmem:[#allocation14] sm:$0x1] %v512
    %v514 = vpack.c.bf16 %v469, %v468
    %v515 = vld [vmem:[#allocation11] sm:$0xf]
    %v516 = vld [vmem:[#allocation11 + $0x4] sm:$0xf]
    %v517 = vld [vmem:[#allocation11 + $0x8] sm:$0xf]
    %v518 = vld [vmem:[#allocation11 + $0xc] sm:$0xf]
    %v519 = vld [vmem:[#allocation11 + $0x10] sm:$0xf]
    %v520 = vld [vmem:[#allocation11 + $0x14] sm:$0xf]
    %v521 = vld [vmem:[#allocation11 + $0x18] sm:$0xf]
    %v522 = vld [vmem:[#allocation11 + $0x1c] sm:$0xf]
    %v523 = vld [vmem:[#allocation11 + $0x20] sm:$0xf]
    %v524 = vld [vmem:[#allocation11 + $0x24] sm:$0xf]
    %v525 = vld [vmem:[#allocation11 + $0x28] sm:$0xf]
    %v526 = vld [vmem:[#allocation11 + $0x2c] sm:$0xf]
    %v527 = vld [vmem:[#allocation11 + $0x30] sm:$0xf]
    %v528 = vld [vmem:[#allocation11 + $0x34] sm:$0xf]
    %v529 = vld [vmem:[#allocation11 + $0x38] sm:$0xf]
    %v530 = vld [vmem:[#allocation11 + $0x3c] sm:$0xf]
    %v531 = vld [vmem:[%s9] sm:$0x1]
    %v533 = vlaneseq
    %v534 = vshrl.u32 %v533, 7
    %v535 = vsub.s32 0, %v534
    %v536 = vrot.slane %v531, %v535
    %v554 = vunpack.c.l.b16 %v515
    %v555 = vunpack.c.l.b16 %v516
    %v556 = vunpack.c.l.b16 %v517
    %v557 = vunpack.c.l.b16 %v518
    %v558 = vunpack.c.l.b16 %v519
    %v559 = vunpack.c.l.b16 %v520
    %v560 = vunpack.c.l.b16 %v521
    %v561 = vunpack.c.l.b16 %v522
    %v562 = vunpack.c.l.b16 %v523
    %v563 = vunpack.c.l.b16 %v524
    %v564 = vunpack.c.l.b16 %v525
    %v565 = vunpack.c.l.b16 %v526
    %v566 = vunpack.c.l.b16 %v527
    %v567 = vunpack.c.l.b16 %v528
    %v568 = vunpack.c.l.b16 %v529
    %v569 = vunpack.c.l.b16 %v530
    %v570 = vpack.c.b16 %v555, %v554
    %v571 = vpack.c.b16 %v557, %v556
    %v572 = vpack.c.b16 %v559, %v558
    %v573 = vpack.c.b16 %v561, %v560
    %v574 = vpack.c.b16 %v563, %v562
    %v575 = vpack.c.b16 %v565, %v564
    %v576 = vpack.c.b16 %v567, %v566
    %v577 = vpack.c.b16 %v569, %v568
    %586 = vmatprep.subr.bf16.mxu0 0
    %587 = vmatpush1.bf16.msra.mxu0 %v570
    %588 = vmatprep.subr.bf16.mxu0 0
    %589 = vmatpush1.bf16.msra.mxu0 %v571
    %590 = vmatprep.subr.bf16.mxu0 0
    %591 = vmatpush1.bf16.msra.mxu0 %v572
    %592 = vmatprep.subr.bf16.mxu0 0
    %593 = vmatpush1.bf16.msra.mxu0 %v573
    %594 = vmatprep.subr.bf16.mxu0 0
    %595 = vmatpush1.bf16.msra.mxu0 %v574
    %596 = vmatprep.subr.bf16.mxu0 0
    %597 = vmatpush1.bf16.msra.mxu0 %v575
    %598 = vmatprep.subr.bf16.mxu0 0
    %599 = vmatpush1.bf16.msra.mxu0 %v576
    %600 = vmatprep.subr.bf16.mxu0 0
    %601 = vmatpush1.bf16.msra.mxu0 %v577
    %602 = vmatprep.subr.bf16.mxu0 0
    %603 = vmatpush1.bf16.msra.mxu0 0
    %604 = vmatprep.subr.bf16.mxu0 0
    %605 = vmatpush1.bf16.msra.mxu0 0
    %606 = vmatprep.subr.bf16.mxu0 0
    %607 = vmatpush1.bf16.msra.mxu0 0
    %608 = vmatprep.subr.bf16.mxu0 0
    %609 = vmatpush1.bf16.msra.mxu0 0
    %610 = vmatprep.subr.bf16.mxu0 0
    %611 = vmatpush1.bf16.msra.mxu0 0
    %612 = vmatprep.subr.bf16.mxu0 0
    %613 = vmatpush1.bf16.msra.mxu0 0
    %614 = vmatprep.subr.bf16.mxu0 0
    %615 = vmatpush1.bf16.msra.mxu0 0
    %616 = vmatprep.subr.bf16.mxu0 0
    %617 = vmatpush1.bf16.msra.mxu0 0
    %618 = vmatprep.mubr.bf16.mxu0 0
    %619 = vmatmul.mubr.bf16.gmra.mrb[0].mxu0 %v514
    %v620 = vpop.f32.mrb[0].mxu0
    %v621 = vadd.f32 %v536, %v620
    %v622 = vpop.f32.mrb[0].mxu0
    %v623 = vpop.f32.mrb[0].mxu0
    %v624 = vadd.f32 %v536, %v623
    %v625 = vpop.f32.mrb[0].mxu0
    %626 = vdwg.mxu0
    %v627 = vmax.f32 %v621, 0.0
    %v628 = vmax.f32 %v624, 0.0
    %v629 = vpack.c.bf16 %v628, %v627
    %v630 = vld [vmem:[%s10] sm:$0xf]
    %v631 = vld [vmem:[%s10 + $0x4] sm:$0xf]
    %v632 = vld [vmem:[%s10 + $0x8] sm:$0xf]
    %v633 = vld [vmem:[%s10 + $0xc] sm:$0xf]
    %v634 = vld [vmem:[%s10 + $0x10] sm:$0xf]
    %v635 = vld [vmem:[%s10 + $0x14] sm:$0xf]
    %v636 = vld [vmem:[%s10 + $0x18] sm:$0xf]
    %v637 = vld [vmem:[%s10 + $0x1c] sm:$0xf]
    %v638 = vld [vmem:[%s10 + $0x20] sm:$0xf]
    %v639 = vld [vmem:[%s10 + $0x24] sm:$0xf]
    %v640 = vld [vmem:[%s10 + $0x28] sm:$0xf]
    %v641 = vld [vmem:[%s10 + $0x2c] sm:$0xf]
    %v642 = vld [vmem:[%s10 + $0x30] sm:$0xf]
    %v643 = vld [vmem:[%s10 + $0x34] sm:$0xf]
    %v644 = vld [vmem:[%s10 + $0x38] sm:$0xf]
    %v645 = vld [vmem:[%s10 + $0x3c] sm:$0xf]
    %v646 = vld [vmem:[%s11] sm:$0x1]
    %v648 = vlaneseq
    %v649 = vshrl.u32 %v648, 7
    %v650 = vsub.s32 0, %v649
    %v651 = vrot.slane %v646, %v650
    %v669 = vunpack.c.l.b16 %v630
    %v670 = vunpack.c.l.b16 %v631
    %v671 = vunpack.c.l.b16 %v632
    %v672 = vunpack.c.l.b16 %v633
    %v673 = vunpack.c.l.b16 %v634
    %v674 = vunpack.c.l.b16 %v635
    %v675 = vunpack.c.l.b16 %v636
    %v676 = vunpack.c.l.b16 %v637
    %v677 = vunpack.c.l.b16 %v638
    %v678 = vunpack.c.l.b16 %v639
    %v679 = vunpack.c.l.b16 %v640
    %v680 = vunpack.c.l.b16 %v641
    %v681 = vunpack.c.l.b16 %v642
    %v682 = vunpack.c.l.b16 %v643
    %v683 = vunpack.c.l.b16 %v644
    %v684 = vunpack.c.l.b16 %v645
    %v685 = vpack.c.b16 %v670, %v669
    %v686 = vpack.c.b16 %v672, %v671
    %v687 = vpack.c.b16 %v674, %v673
    %v688 = vpack.c.b16 %v676, %v675
    %v689 = vpack.c.b16 %v678, %v677
    %v690 = vpack.c.b16 %v680, %v679
    %v691 = vpack.c.b16 %v682, %v681
    %v692 = vpack.c.b16 %v684, %v683
    %701 = vmatprep.subr.bf16.mxu0 0
    %702 = vmatpush1.bf16.msra.mxu0 %v685
    %703 = vmatprep.subr.bf16.mxu0 0
    %704 = vmatpush1.bf16.msra.mxu0 %v686
    %705 = vmatprep.subr.bf16.mxu0 0
    %706 = vmatpush1.bf16.msra.mxu0 %v687
    %707 = vmatprep.subr.bf16.mxu0 0
    %708 = vmatpush1.bf16.msra.mxu0 %v688
    %709 = vmatprep.subr.bf16.mxu0 0
    %710 = vmatpush1.bf16.msra.mxu0 %v689
    %711 = vmatprep.subr.bf16.mxu0 0
    %712 = vmatpush1.bf16.msra.mxu0 %v690
    %713 = vmatprep.subr.bf16.mxu0 0
    %714 = vmatpush1.bf16.msra.mxu0 %v691
    %715 = vmatprep.subr.bf16.mxu0 0
    %716 = vmatpush1.bf16.msra.mxu0 %v692
    %717 = vmatprep.subr.bf16.mxu0 0
    %718 = vmatpush1.bf16.msra.mxu0 0
    %719 = vmatprep.subr.bf16.mxu0 0
    %720 = vmatpush1.bf16.msra.mxu0 0
    %721 = vmatprep.subr.bf16.mxu0 0
    %722 = vmatpush1.bf16.msra.mxu0 0
    %723 = vmatprep.subr.bf16.mxu0 0
    %724 = vmatpush1.bf16.msra.mxu0 0
    %725 = vmatprep.subr.bf16.mxu0 0
    %726 = vmatpush1.bf16.msra.mxu0 0
    %727 = vmatprep.subr.bf16.mxu0 0
    %728 = vmatpush1.bf16.msra.mxu0 0
    %729 = vmatprep.subr.bf16.mxu0 0
    %730 = vmatpush1.bf16.msra.mxu0 0
    %731 = vmatprep.subr.bf16.mxu0 0
    %732 = vmatpush1.bf16.msra.mxu0 0
    %733 = vmatprep.mubr.bf16.mxu0 0
    %734 = vmatmul.mubr.bf16.gmra.mrb[0].mxu0 %v629
    %v735 = vpop.f32.mrb[0].mxu0
    %v736 = vadd.f32 %v651, %v735
    %v737 = vpop.f32.mrb[0].mxu0
    %v738 = vpop.f32.mrb[0].mxu0
    %v739 = vadd.f32 %v651, %v738
    %v740 = vpop.f32.mrb[0].mxu0
    %741 = vdwg.mxu0
    %742 = vst.msk [vmem:[#allocation13] sm:$0xff] %vm146, %v736
    %743 = vst.msk [vmem:[#allocation13 + $0x8] sm:$0xff] %vm146, %v739
    // Predicated region
    $region74: #{tpu_custom_call.1} parent=1 // pred_check
      _
    $region75: #{tpu_custom_call.1} parent=1 // pred_check_branch
      %745 = sbr.rel (0) target = $region77
    $region76: #{tpu_custom_call.1} parent=1 // pred_region
      %s747 = ssub.s32 256, 256
      %748 = vsyncadd [#allocation4], %s747
      %s749 = sshll.u32 [#allocation13], 4
      %s750 = int_to_ptr.vmem [resolvable:$true] %s749
      %755 = dma.vmem_to_hbm [thread:$0]  %s750, 256, %s12, [#allocation4], 128, 128, 8
    $region77: #{tpu_custom_call.1} parent=1 // pred_fallthru
      _
    // Predicated region
    $region78: #{tpu_custom_call.1} parent=1 // pred_check
      _
    $region79: #{tpu_custom_call.1} parent=1 // pred_check_branch
      %757 = sbr.rel (0) target = $region81
    $region80: #{tpu_custom_call.1} parent=1 // pred_region
      %s759 = ssub.s32 16, 16
      %760 = vsyncadd [#allocation15], %s759
      %s762 = sshll.u32 [#allocation14], 4
      %s763 = int_to_ptr.vmem [resolvable:$true] %s762
      %765 = dma.vmem_to_hbm [thread:$0]  %s763, 16, %s13, [#allocation15]
    $region81: #{tpu_custom_call.1} parent=1 // pred_fallthru
      _
    // Predicated region
    $region82: #{tpu_custom_call.1} parent=1 // pred_check
      _
    $region83: #{tpu_custom_call.1} parent=1 // pred_check_branch
      %767 = sbr.rel (0) target = $region85
    $region84: #{tpu_custom_call.1} parent=1 // pred_region
      %768 = dma.done [#allocation4], 256
    $region85: #{tpu_custom_call.1} parent=1 // pred_fallthru
      _
    // Predicated region
    $region86: #{tpu_custom_call.1} parent=1 // pred_check
      _
    $region87: #{tpu_custom_call.1} parent=1 // pred_check_branch
      %770 = sbr.rel (0) target = $region89
    $region88: #{tpu_custom_call.1} parent=1 // pred_region
      %771 = dma.done [#allocation15], 16
    $region89: #{tpu_custom_call.1} parent=1 // pred_fallthru
      _
    %772 = vsyncpa [#allocation3], 1
    %773 = vsyncpa [#allocation6], 1
    %774 = vsyncpa [#allocation9], 1
    %775 = vsyncpa [#allocation12], 1
    %776 = vsyncpa [#allocation4], 1
    %777 = vsyncpa [#allocation15], 1

</llo_original>
